<compile_context>
chip_gen: v7x
topology: tpu7x:2x2x1
jax: 0.10.0
libtpu: 0.0.40
codegen_flags: <defaults>
</compile_context>

<pallas_src>
import math
import functools

import jax
import jax.numpy as jnp
from jax.experimental import pallas as pl
from jax.experimental.pallas import tpu as pltpu


def _round_up(x, m):
    return (x + m - 1) // m * m


def _pad_to(a, shape, fill=0):
    if a.shape == tuple(shape):
        return a
    pads = [(0, s - d) for d, s in zip(a.shape, shape)]
    return jnp.pad(a, pads, constant_values=fill)


def _curricularface_kernel(xn_ref, pn_ref, phi_ref, ps_ref, t_ref, out_ref,
                           m_ref, l_ref, *,
                           alpha, n_classes, block_n, mask_classes):
    j = pl.program_id(1)
    nj = pl.num_programs(1)

    @pl.when(j == 0)
    def _init():
        m_ref[...] = jnp.full(m_ref.shape, -jnp.inf, dtype=jnp.float32)
        l_ref[...] = jnp.zeros(l_ref.shape, dtype=jnp.float32)

    # NT matmul on the MXU: bf16 inputs (pre-normalized in the wrapper),
    # f32 accumulation.  Contract the embedding dim of both operands.
    cosine = jax.lax.dot_general(
        xn_ref[...], pn_ref[...],
        dimension_numbers=(((1,), (1,)), ((), ())),
        preferred_element_type=jnp.float32)                      # (TM, TN)

    phi = phi_ref[...]                                           # (TM, 1)
    ps = ps_ref[...]                                             # (TM, 1)
    tm = cosine.shape[0]

    # CurricularFace hard-negative modulation (non-target columns).
    neg = jnp.where(phi >= cosine, cosine, cosine * (cosine + ps))

    # Local column iota vs label shifted into this tile's frame (no per-element
    # col0 add).
    lid = jax.lax.broadcasted_iota(jnp.int32, (tm, block_n), 1)
    t_local = t_ref[...] - j * block_n                           # (TM, 1)
    logit = alpha * jnp.where(lid == t_local, phi, neg)

    def _lse_update(lg):
        m_prev = m_ref[...]
        m_new = jnp.maximum(m_prev, jnp.max(lg, axis=-1, keepdims=True))
        l_ref[...] = (l_ref[...] * jnp.exp(m_prev - m_new)
                      + jnp.sum(jnp.exp(lg - m_new), axis=-1, keepdims=True))
        m_ref[...] = m_new

    if mask_classes:
        # Padded class columns only exist in the last class tile, so the
        # masking select is only emitted / executed there.
        @pl.when(j < nj - 1)
        def _body():
            _lse_update(logit)

        @pl.when(j == nj - 1)
        def _body_last():
            _lse_update(jnp.where(lid < n_classes - j * block_n, logit,
                                  jnp.float32(-1e30)))
    else:
        _lse_update(logit)

    @pl.when(j == nj - 1)
    def _finalize():
        lse = m_ref[...] + jnp.log(l_ref[...])
        out_ref[...] = lse - alpha * phi_ref[...]                # per-row CE loss


def curricularface_loss(X, T, proxies, pos_sim=None, mrg=0.3, alpha=32.0, *,
                        block_m=512, block_n=512,
                        matmul_dtype=jnp.bfloat16, interpret=False):
    """CurricularFace.forward() loss. X:(B,D), T:(B,), proxies:(C,D), pos_sim:(C,)."""
    B, D = X.shape
    C, D2 = proxies.shape
    assert D == D2
    if pos_sim is None:
        pos_sim = jnp.zeros((C,), jnp.float32)
    T = T.astype(jnp.int32).reshape(B)

    cos_m, sin_m = math.cos(mrg), math.sin(mrg)
    th = math.cos(math.pi - mrg)
    mm = math.sin(math.pi - mrg) * mrg
    eps_sq = 1e-24  # (1e-12)^2, matches F.normalize's eps on the norm

    # ---- O(N*D) preprocessing hoisted out of the kernel (plain XLA ops) -----
    x = X.astype(jnp.float32)
    x_n = x * jax.lax.rsqrt(
        jnp.maximum(jnp.sum(x * x, axis=-1, keepdims=True), eps_sq))
    p = proxies.astype(jnp.float32)
    p_n = p * jax.lax.rsqrt(
        jnp.maximum(jnp.sum(p * p, axis=-1, keepdims=True), eps_sq))

    # Target-column phi with the same bf16 rounding the MXU cosine sees.
    pt_n = jnp.take(p_n, T, axis=0)                              # (B, D)
    if matmul_dtype == jnp.float32:
        xq, pq = x_n, pt_n
    else:
        xq = x_n.astype(matmul_dtype).astype(jnp.float32)
        pq = pt_n.astype(matmul_dtype).astype(jnp.float32)
    tc = jnp.sum(xq * pq, axis=-1, keepdims=True)                # (B, 1)
    sine = jnp.sqrt(jnp.maximum(1.0 - tc * tc, 0.0))             # clamp: no NaN
    phi = jnp.where(tc > th, tc * cos_m - sine * sin_m, tc - mm) # (B, 1)

    # ---- pad to TPU-aligned tiles (copies only when actually misaligned) ----
    Dp = _round_up(D, 128)            # lane dim
    Bp0 = _round_up(B, 8)
    TM = min(_round_up(block_m, 8), Bp0)
    if Bp0 // TM < 2 and Bp0 >= 16:   # keep >= 2 batch tiles for v7x megacore
        TM = _round_up((Bp0 + 1) // 2, 8)
    Bp = _round_up(B, TM)
    Cp0 = _round_up(C, 128)
    TN = min(_round_up(block_n, 128), Cp0)
    Cp = _round_up(C, TN)
    assert Cp - C < TN, "a class tile must never be entirely padding"

    Xn = _pad_to(x_n.astype(matmul_dtype), (Bp, Dp))
    Pn = _pad_to(p_n.astype(matmul_dtype), (Cp, Dp))
    Phi = _pad_to(phi, (Bp, 1))
    PSt = _pad_to(jnp.take(pos_sim.astype(jnp.float32), T)[:, None], (Bp, 1))
    Tp = _pad_to(T[:, None], (Bp, 1), fill=-1)                   # -1: never matches

    grid = (Bp // TM, Cp // TN)
    kernel = functools.partial(
        _curricularface_kernel,
        alpha=float(alpha), n_classes=C, block_n=TN, mask_classes=(Cp != C))

    itemsize = jnp.dtype(matmul_dtype).itemsize
    # Double-buffered xn / proxy tiles + a few f32 (TM,TN) intermediates + slack.
    vmem_need = (2 * TM * Dp * itemsize
                 + 2 * TN * Dp * itemsize
                 + 4 * TM * TN * 4
                 + 64 * 1024)
    vmem_limit = int(min(max(2 * vmem_need, 16 << 20), 56 << 20))

    cost = pl.CostEstimate(
        flops=2 * Bp * Cp * Dp + 8 * Bp * Cp,
        transcendentals=Bp * Cp,
        bytes_accessed=((Bp // TM) * Cp * Dp * itemsize   # proxies per batch tile
                        + Bp * Dp * itemsize              # normalized X
                        + Bp * 4 * 4))

    per_row = pl.pallas_call(
        kernel,
        out_shape=jax.ShapeDtypeStruct((Bp, 1), jnp.float32),
        grid_spec=pltpu.PrefetchScalarGridSpec(
            num_scalar_prefetch=0,
            grid=grid,
            in_specs=[
                pl.BlockSpec((TM, Dp), lambda i, j: (i, 0)),   # normalized X (bf16)
                pl.BlockSpec((TN, Dp), lambda i, j: (j, 0)),   # normalized proxies (bf16)
                pl.BlockSpec((TM, 1), lambda i, j: (i, 0)),    # target-column phi
                pl.BlockSpec((TM, 1), lambda i, j: (i, 0)),    # pos_sim[T]
                pl.BlockSpec((TM, 1), lambda i, j: (i, 0)),    # labels
            ],
            out_specs=pl.BlockSpec((TM, 1), lambda i, j: (i, 0)),
            scratch_shapes=[
                pltpu.VMEM((TM, 1), jnp.float32),     # running max
                pltpu.VMEM((TM, 1), jnp.float32),     # running sum-exp
            ],
        ),
        compiler_params=pltpu.CompilerParams(
            dimension_semantics=("parallel", "arbitrary"),
            vmem_limit_bytes=vmem_limit),
        cost_estimate=cost,
        interpret=interpret,
    )(Xn, Pn, Phi, PSt, Tp)

    # Mean over the true (unpadded) batch.
    return jnp.sum(per_row[:B, 0]) / B


def curricularface_loss_ref(X, T, proxies, pos_sim, mrg=0.3, alpha=32.0,
                            matmul_dtype=jnp.bfloat16):
    """Pure-JAX reference mirroring CurricularFace.forward()."""
    cos_m, sin_m = math.cos(mrg), math.sin(mrg)
    th = math.cos(math.pi - mrg)
    mm = math.sin(math.pi - mrg) * mrg
    x = X.astype(jnp.float32)
    p = proxies.astype(jnp.float32)
    x_n = x * jax.lax.rsqrt(jnp.maximum(jnp.sum(x * x, -1, keepdims=True), 1e-24))
    p_n = p * jax.lax.rsqrt(jnp.maximum(jnp.sum(p * p, -1, keepdims=True), 1e-24))
    cosine = jnp.dot(x_n.astype(matmul_dtype), p_n.astype(matmul_dtype).T,
                     preferred_element_type=jnp.float32)
    sine = jnp.sqrt(jnp.maximum(1.0 - cosine * cosine, 0.0))
    phi = cosine * cos_m - sine * sin_m
    phi = jnp.where(cosine > th, phi, cosine - mm)
    one_hot = jax.nn.one_hot(T, proxies.shape[0], dtype=jnp.float32)
    pos_phi = jnp.take_along_axis(phi, T[:, None], axis=1)
    ps = pos_sim.astype(jnp.float32)[T][:, None]
    neg_cosine = jnp.where(pos_phi >= cosine, cosine, cosine * (cosine + ps))
    logit = (one_hot * phi + (1.0 - one_hot) * neg_cosine) * alpha
    lse = jax.scipy.special.logsumexp(logit, axis=-1)
    tgt = jnp.take_along_axis(logit, T[:, None], axis=1)[:, 0]
    return jnp.mean(lse - tgt)


if __name__ == "__main__":
    # Small, deliberately unaligned shapes: exercises batch tiling, class
    # tiling, online LSE across class tiles, and row/class/D padding.
    B, D, C = 80, 72, 300          # batch, sz_embed, nb_classes
    mrg, alpha = 0.3, 32.0

    key = jax.random.PRNGKey(0)
    kx, kp, kt, ks = jax.random.split(key, 4)

    X = jax.random.normal(kx, (B, D), dtype=jnp.float32)
    # kaiming_uniform_(mode='fan_out'): bound = sqrt(6 / nb_classes)
    bound = math.sqrt(6.0 / C)
    proxies = jax.random.uniform(kp, (C, D), minval=-bound, maxval=bound,
                                 dtype=jnp.float32)
    T = jax.random.randint(kt, (B,), 0, C, dtype=jnp.int32)
    # pos_sim buffer (zeros at module init; use a non-trivial state so the
    # curricular hard-negative modulation path is actually exercised).
    pos_sim = jax.random.uniform(ks, (C,), minval=0.0, maxval=0.5,
                                 dtype=jnp.float32)

    ref = curricularface_loss_ref(X, T, proxies, pos_sim, mrg=mrg, alpha=alpha)

    # Small tiles: multi-tile grid on both axes (2D pipeline, online LSE).
    loss_small = curricularface_loss(X, T, proxies, pos_sim, mrg=mrg,
                                     alpha=alpha, block_m=32, block_n=128)
    loss_small = jax.block_until_ready(loss_small)
    assert jnp.allclose(loss_small, ref, atol=5e-3, rtol=5e-3), (loss_small, ref)

    # Default tiles: exercises the >=2-batch-tile cap and single class tile
    # with padded classes masked only on the last (only) tile.
    loss_big = curricularface_loss(X, T, proxies, pos_sim, mrg=mrg, alpha=alpha)
    loss_big = jax.block_until_ready(loss_big)
    assert jnp.allclose(loss_big, ref, atol=5e-3, rtol=5e-3), (loss_big, ref)

    print("KERNEL_OK")
</pallas_src>

<mosaic_0001>
module attributes {stable_mosaic.version = 11 : i64} {
  func.func @_curricularface_kernel(%arg0: i32, %arg1: i32, %arg2: memref<32x128xbf16, #tpu.memory_space<vmem>>, %arg3: memref<128x128xbf16, #tpu.memory_space<vmem>>, %arg4: memref<32x1xf32, #tpu.memory_space<vmem>>, %arg5: memref<32x1xf32, #tpu.memory_space<vmem>>, %arg6: memref<32x1xi32, #tpu.memory_space<vmem>>, %arg7: memref<32x1xf32, #tpu.memory_space<vmem>>, %arg8: memref<32x1xf32, #tpu.memory_space<vmem>>, %arg9: memref<32x1xf32, #tpu.memory_space<vmem>>) attributes {dimension_semantics = [#tpu.dimension_semantics<parallel>, #tpu.dimension_semantics<arbitrary>], iteration_bounds = array<i64: 3, 3>, scalar_prefetch = 0 : i64, scratch_operands = 2 : i64, tpu.core_type = #tpu.core_type<tc>, window_params = [{transform_indices = @transform_0, window_bounds = array<i64: 32, 128>}, {transform_indices = @transform_1, window_bounds = array<i64: 128, 128>}, {transform_indices = @transform_2, window_bounds = array<i64: 32, 1>}, {transform_indices = @transform_3, window_bounds = array<i64: 32, 1>}, {transform_indices = @transform_4, window_bounds = array<i64: 32, 1>}, {transform_indices = @transform_5, window_bounds = array<i64: 32, 1>}]} {
    %c0_i32 = arith.constant 0 : i32
    %0 = arith.cmpi eq, %arg1, %c0_i32 : i32
    %1 = arith.extui %0 : i1 to i32
    %c0_i32_0 = arith.constant 0 : i32
    %2 = arith.cmpi ne, %1, %c0_i32_0 : i32
    scf.if %2 {
      %cst_16 = arith.constant 0xFF800000 : f32
      %35 = vector.broadcast %cst_16 : f32 to vector<32x1xf32>
      %c0_17 = arith.constant 0 : index
      %c0_18 = arith.constant 0 : index
      %36 = vector.load %arg8[%c0_17, %c0_18] : memref<32x1xf32, #tpu.memory_space<vmem>>, vector<32x1xf32>
      tpu.vector_store %arg8[%c0_17, %c0_18], %35 {strides = array<i32>} : memref<32x1xf32, #tpu.memory_space<vmem>>, vector<32x1xf32>,
      %cst_19 = arith.constant 0.000000e+00 : f32
      %37 = vector.broadcast %cst_19 : f32 to vector<32x1xf32>
      %c0_20 = arith.constant 0 : index
      %c0_21 = arith.constant 0 : index
      %38 = vector.load %arg9[%c0_20, %c0_21] : memref<32x1xf32, #tpu.memory_space<vmem>>, vector<32x1xf32>
      tpu.vector_store %arg9[%c0_20, %c0_21], %37 {strides = array<i32>} : memref<32x1xf32, #tpu.memory_space<vmem>>, vector<32x1xf32>,
    } else {
    }
    %c0 = arith.constant 0 : index
    %c0_1 = arith.constant 0 : index
    %3 = vector.load %arg2[%c0, %c0_1] : memref<32x128xbf16, #tpu.memory_space<vmem>>, vector<32x128xbf16>
    %c0_2 = arith.constant 0 : index
    %c0_3 = arith.constant 0 : index
    %4 = vector.load %arg3[%c0_2, %c0_3] : memref<128x128xbf16, #tpu.memory_space<vmem>>, vector<128x128xbf16>
    %cst = arith.constant dense<0.000000e+00> : vector<32x128xf32>
    %5 = tpu.matmul %3, %4, %cst {dimension_numbers = #tpu.dot_dimension_numbers<[1], [1], [0], [0], [0, 0, 1, 0], [], []>} : vector<32x128xbf16>, vector<128x128xbf16>, vector<32x128xf32> -> vector<32x128xf32>
    %c0_4 = arith.constant 0 : index
    %c0_5 = arith.constant 0 : index
    %6 = vector.load %arg4[%c0_4, %c0_5] : memref<32x1xf32, #tpu.memory_space<vmem>>, vector<32x1xf32>
    %c0_6 = arith.constant 0 : index
    %c0_7 = arith.constant 0 : index
    %7 = vector.load %arg5[%c0_6, %c0_7] : memref<32x1xf32, #tpu.memory_space<vmem>>, vector<32x1xf32>
    %8 = vector.broadcast %6 : vector<32x1xf32> to vector<32x128xf32>
    %9 = arith.cmpf oge, %8, %5 : vector<32x128xf32>
    %10 = vector.broadcast %7 : vector<32x1xf32> to vector<32x128xf32>
    %11 = arith.addf %5, %10 : vector<32x128xf32>
    %12 = arith.mulf %5, %11 : vector<32x128xf32>
    %13 = arith.select %9, %5, %12 : vector<32x128xi1>, vector<32x128xf32>
    %14 = tpu.iota {dimensions = array<i32: 1>} : vector<32x128xi32>
    %c0_8 = arith.constant 0 : index
    %c0_9 = arith.constant 0 : index
    %15 = vector.load %arg6[%c0_8, %c0_9] : memref<32x1xi32, #tpu.memory_space<vmem>>, vector<32x1xi32>
    %c128_i32 = arith.constant 128 : i32
    %16 = arith.muli %arg1, %c128_i32 : i32
    %17 = vector.broadcast %16 : i32 to vector<32x1xi32>
    %18 = arith.subi %15, %17 : vector<32x1xi32>
    %19 = vector.broadcast %18 : vector<32x1xi32> to vector<32x128xi32>
    %20 = arith.cmpi eq, %14, %19 : vector<32x128xi32>
    %21 = vector.shape_cast %6 : vector<32x1xf32> to vector<32x1xf32>
    %22 = vector.broadcast %21 : vector<32x1xf32> to vector<32x128xf32>
    %23 = arith.select %20, %22, %13 : vector<32x128xi1>, vector<32x128xf32>
    %cst_10 = arith.constant 3.200000e+01 : f32
    %24 = vector.broadcast %cst_10 : f32 to vector<32x128xf32>
    %25 = arith.mulf %24, %23 : vector<32x128xf32>
    %c2_i32 = arith.constant 2 : i32
    %26 = arith.cmpi slt, %arg1, %c2_i32 : i32
    %27 = arith.extui %26 : i1 to i32
    %c0_i32_11 = arith.constant 0 : i32
    %28 = arith.cmpi ne, %27, %c0_i32_11 : i32
    scf.if %28 {
      %c0_16 = arith.constant 0 : index
      %c0_17 = arith.constant 0 : index
      %35 = vector.load %arg8[%c0_16, %c0_17] : memref<32x1xf32, #tpu.memory_space<vmem>>, vector<32x1xf32>
      %cst_18 = arith.constant dense<0xFF800000> : vector<32xf32>
      %36 = vector.multi_reduction <maximumf>, %25, %cst_18 [1] : vector<32x128xf32> to vector<32xf32>
      %37 = vector.shape_cast %36 : vector<32xf32> to vector<32x1xf32>
      %38 = arith.maximumf %35, %37 : vector<32x1xf32>
      %c0_19 = arith.constant 0 : index
      %c0_20 = arith.constant 0 : index
      %39 = vector.load %arg9[%c0_19, %c0_20] : memref<32x1xf32, #tpu.memory_space<vmem>>, vector<32x1xf32>
      %40 = arith.subf %35, %38 : vector<32x1xf32>
      %41 = math.exp %40 : vector<32x1xf32>
      %42 = arith.mulf %39, %41 : vector<32x1xf32>
      %43 = vector.broadcast %38 : vector<32x1xf32> to vector<32x128xf32>
      %44 = arith.subf %25, %43 : vector<32x128xf32>
      %45 = math.exp %44 : vector<32x128xf32>
      %cst_21 = arith.constant dense<0.000000e+00> : vector<32xf32>
      %46 = vector.multi_reduction <add>, %45, %cst_21 [1] : vector<32x128xf32> to vector<32xf32>
      %47 = vector.shape_cast %46 : vector<32xf32> to vector<32x1xf32>
      %48 = arith.addf %42, %47 : vector<32x1xf32>
      %c0_22 = arith.constant 0 : index
      %c0_23 = arith.constant 0 : index
      %49 = vector.load %arg9[%c0_22, %c0_23] : memref<32x1xf32, #tpu.memory_space<vmem>>, vector<32x1xf32>
      tpu.vector_store %arg9[%c0_22, %c0_23], %48 {strides = array<i32>} : memref<32x1xf32, #tpu.memory_space<vmem>>, vector<32x1xf32>,
      %c0_24 = arith.constant 0 : index
      %c0_25 = arith.constant 0 : index
      %50 = vector.load %arg8[%c0_24, %c0_25] : memref<32x1xf32, #tpu.memory_space<vmem>>, vector<32x1xf32>
      tpu.vector_store %arg8[%c0_24, %c0_25], %38 {strides = array<i32>} : memref<32x1xf32, #tpu.memory_space<vmem>>, vector<32x1xf32>,
    } else {
    }
    %c2_i32_12 = arith.constant 2 : i32
    %29 = arith.cmpi eq, %arg1, %c2_i32_12 : i32
    %30 = arith.extui %29 : i1 to i32
    %c0_i32_13 = arith.constant 0 : i32
    %31 = arith.cmpi ne, %30, %c0_i32_13 : i32
    scf.if %31 {
      %c128_i32_16 = arith.constant 128 : i32
      %35 = arith.muli %arg1, %c128_i32_16 : i32
      %c300_i32 = arith.constant 300 : i32
      %36 = arith.subi %c300_i32, %35 : i32
      %37 = vector.broadcast %36 : i32 to vector<32x128xi32>
      %38 = arith.cmpi slt, %14, %37 : vector<32x128xi32>
      %cst_17 = arith.constant -1.000000e+30 : f32
      %39 = vector.broadcast %cst_17 : f32 to vector<32x128xf32>
      %40 = arith.select %38, %25, %39 : vector<32x128xi1>, vector<32x128xf32>
      %c0_18 = arith.constant 0 : index
      %c0_19 = arith.constant 0 : index
      %41 = vector.load %arg8[%c0_18, %c0_19] : memref<32x1xf32, #tpu.memory_space<vmem>>, vector<32x1xf32>
      %cst_20 = arith.constant dense<0xFF800000> : vector<32xf32>
      %42 = vector.multi_reduction <maximumf>, %40, %cst_20 [1] : vector<32x128xf32> to vector<32xf32>
      %43 = vector.shape_cast %42 : vector<32xf32> to vector<32x1xf32>
      %44 = arith.maximumf %41, %43 : vector<32x1xf32>
      %c0_21 = arith.constant 0 : index
      %c0_22 = arith.constant 0 : index
      %45 = vector.load %arg9[%c0_21, %c0_22] : memref<32x1xf32, #tpu.memory_space<vmem>>, vector<32x1xf32>
      %46 = arith.subf %41, %44 : vector<32x1xf32>
      %47 = math.exp %46 : vector<32x1xf32>
      %48 = arith.mulf %45, %47 : vector<32x1xf32>
      %49 = vector.broadcast %44 : vector<32x1xf32> to vector<32x128xf32>
      %50 = arith.subf %40, %49 : vector<32x128xf32>
      %51 = math.exp %50 : vector<32x128xf32>
      %cst_23 = arith.constant dense<0.000000e+00> : vector<32xf32>
      %52 = vector.multi_reduction <add>, %51, %cst_23 [1] : vector<32x128xf32> to vector<32xf32>
      %53 = vector.shape_cast %52 : vector<32xf32> to vector<32x1xf32>
      %54 = arith.addf %48, %53 : vector<32x1xf32>
      %c0_24 = arith.constant 0 : index
      %c0_25 = arith.constant 0 : index
      %55 = vector.load %arg9[%c0_24, %c0_25] : memref<32x1xf32, #tpu.memory_space<vmem>>, vector<32x1xf32>
      tpu.vector_store %arg9[%c0_24, %c0_25], %54 {strides = array<i32>} : memref<32x1xf32, #tpu.memory_space<vmem>>, vector<32x1xf32>,
      %c0_26 = arith.constant 0 : index
      %c0_27 = arith.constant 0 : index
      %56 = vector.load %arg8[%c0_26, %c0_27] : memref<32x1xf32, #tpu.memory_space<vmem>>, vector<32x1xf32>
      tpu.vector_store %arg8[%c0_26, %c0_27], %44 {strides = array<i32>} : memref<32x1xf32, #tpu.memory_space<vmem>>, vector<32x1xf32>,
    } else {
    }
    %c2_i32_14 = arith.constant 2 : i32
    %32 = arith.cmpi eq, %arg1, %c2_i32_14 : i32
    %33 = arith.extui %32 : i1 to i32
    %c0_i32_15 = arith.constant 0 : i32
    %34 = arith.cmpi ne, %33, %c0_i32_15 : i32
    scf.if %34 {
      %c0_16 = arith.constant 0 : index
      %c0_17 = arith.constant 0 : index
      %35 = vector.load %arg8[%c0_16, %c0_17] : memref<32x1xf32, #tpu.memory_space<vmem>>, vector<32x1xf32>
      %c0_18 = arith.constant 0 : index
      %c0_19 = arith.constant 0 : index
      %36 = vector.load %arg9[%c0_18, %c0_19] : memref<32x1xf32, #tpu.memory_space<vmem>>, vector<32x1xf32>
      %37 = math.log %36 : vector<32x1xf32>
      %38 = arith.addf %35, %37 : vector<32x1xf32>
      %c0_20 = arith.constant 0 : index
      %c0_21 = arith.constant 0 : index
      %39 = vector.load %arg4[%c0_20, %c0_21] : memref<32x1xf32, #tpu.memory_space<vmem>>, vector<32x1xf32>
      %cst_22 = arith.constant 3.200000e+01 : f32
      %40 = vector.broadcast %cst_22 : f32 to vector<32x1xf32>
      %41 = arith.mulf %40, %39 : vector<32x1xf32>
      %42 = arith.subf %38, %41 : vector<32x1xf32>
      %c0_23 = arith.constant 0 : index
      %c0_24 = arith.constant 0 : index
      %43 = vector.load %arg7[%c0_23, %c0_24] : memref<32x1xf32, #tpu.memory_space<vmem>>, vector<32x1xf32>
      tpu.vector_store %arg7[%c0_23, %c0_24], %42 {strides = array<i32>} : memref<32x1xf32, #tpu.memory_space<vmem>>, vector<32x1xf32>,
    } else {
    }
    return
  }
  func.func @transform_0(%arg0: i32, %arg1: i32) -> (i32, i32) {
    %c0_i32 = arith.constant 0 : i32
    %c0_i32_0 = arith.constant 0 : i32
    return %arg0, %c0_i32 : i32, i32
  }
  func.func @transform_1(%arg0: i32, %arg1: i32) -> (i32, i32) {
    %c0_i32 = arith.constant 0 : i32
    %c0_i32_0 = arith.constant 0 : i32
    return %arg1, %c0_i32 : i32, i32
  }
  func.func @transform_2(%arg0: i32, %arg1: i32) -> (i32, i32) {
    %c0_i32 = arith.constant 0 : i32
    %c0_i32_0 = arith.constant 0 : i32
    return %arg0, %c0_i32 : i32, i32
  }
  func.func @transform_3(%arg0: i32, %arg1: i32) -> (i32, i32) {
    %c0_i32 = arith.constant 0 : i32
    %c0_i32_0 = arith.constant 0 : i32
    return %arg0, %c0_i32 : i32, i32
  }
  func.func @transform_4(%arg0: i32, %arg1: i32) -> (i32, i32) {
    %c0_i32 = arith.constant 0 : i32
    %c0_i32_0 = arith.constant 0 : i32
    return %arg0, %c0_i32 : i32, i32
  }
  func.func @transform_5(%arg0: i32, %arg1: i32) -> (i32, i32) {
    %c0_i32 = arith.constant 0 : i32
    %c0_i32_0 = arith.constant 0 : i32
    return %arg0, %c0_i32 : i32, i32
  }
}

</mosaic_0001>

<llo_original>
// kernel: tpu_custom_call.1
$region0: #{tpu_custom_call.1}
  #allocation0 [shape = 'u32[]', space=smem, size = 0x4, offset = 0x4, fixed_abs, tag = 'smem constant byte address 0x4 - core index']
  #allocation1 [shape = 'u32[144,128]{1,0:T(1,128)}', space=vmem, size = 0x12000, scoped, tag = 'internal scratch']
  #allocation2 [shape = 'f32[32,1]{1,0:T(8,128)}', space=vmem, size = 0x4000, scoped, tag = 'scratch operand']
  #allocation3 [shape = 'f32[32,1]{1,0:T(8,128)}', space=vmem, size = 0x4000, scoped, tag = 'scratch operand']
  %s0 = inlined_call_operand.vmem [shape: bf16[96,128], index: 0, kind: input, shape index: {}]
  %s1 = inlined_call_operand.vmem [shape: bf16[384,128], index: 1, kind: input, shape index: {}]
  %s2 = inlined_call_operand.vmem [shape: f32[96,1], index: 2, kind: input, shape index: {}]
  %s3 = inlined_call_operand.vmem [shape: f32[96,1], index: 3, kind: input, shape index: {}]
  %s4 = inlined_call_operand.vmem [shape: s32[96,1], index: 4, kind: input, shape index: {}]
  %s5 = inlined_call_operand.vmem [shape: f32[96,1], index: 5, kind: output, shape index: {}]
  %s6 = sld [smem:[#allocation0]]
  $region65: #{tpu_custom_call.1} parent=0
    _
  %s8 = ssub.s32 1, %s6
  %s9 = scalar_select 0, %s8, %s6
  loop: start=0, step=1, limit=11
  $region2: #{tpu_custom_call.1} parent=0 // loop_pre_header
    _
  $region3: #{tpu_custom_call.1} parent=0 // loop_header
    %s11 = sphi 0, %s15
    %p12 = scmp.ge.s32.totalorder %s11, 11
    %s18 = sphi 0, %s30
    %s19 = sphi 0, %s26
    %s20 = sphi 0, %s18
    %s21 = sphi 0, %s19
    %s22 = sphi 0, %s20
    %s23 = sphi 0, %s21
    %s33 = sphi 0, %s35
    %s36 = sphi 0, %s33
    %s37 = sphi 0, %s36
    %s53 = sphi 0, %s37
    %s59 = sphi 0, %s61
    %s62 = sphi 0, %s59
    %s63 = sphi 0, %s62
    %s79 = sphi 0, %s63
    %s85 = sphi 0, %s87
    %s88 = sphi 0, %s85
    %s89 = sphi 0, %s88
    %s105 = sphi 0, %s89
    %s111 = sphi 0, %s113
    %s114 = sphi 0, %s111
    %s115 = sphi 0, %s114
    %s131 = sphi 0, %s115
    %s137 = sphi 0, %s139
    %s140 = sphi 0, %s137
    %s141 = sphi 0, %s140
    %s157 = sphi 0, %s141
    %s163 = sphi 0, %s165
    %s166 = sphi 0, %s163
    %s167 = sphi 0, %s166
    %s183 = sphi 0, %s167
  $region4: #{tpu_custom_call.1} parent=0 // loop_header_branch
    %14 = sbr.rel (%p12) target = $region8
  $region5: #{tpu_custom_call.1} parent=0 // loop_body
    %s16 = ssub.s32 %s11, 1
    %s17 = ssub.s32 %s11, 2
    %s24 = sadd.s32 1, %s19
    %p25 = scmp.ge.s32.totalorder %s24, 3
    %s26 = scalar_select %p25, 0, %s24
    %s27 = sadd.s32 1, %s18
    %s28 = scalar_select %p25, %s27, %s18
    %p29 = scmp.ge.s32.totalorder %s28, 3
    %s30 = scalar_select %p29, 0, %s28
    %s31 = ssub.s32 %s18, %s30
    %p32 = scmp.eq.s32.totalorder %s31, 0
    %s34 = sadd.s32 %s33, 1
    %s35 = scalar_select %p32, %s33, %s34
    %p38 = pneg %p32
    %p39 = scmp.eq.s32.totalorder %s11, 8
    %p40 = por %p38, %p39
    %p41 = scmp.ne.s32.totalorder %s33, %s36
    %p42 = scmp.eq.s32.totalorder %s11, 0
    %p43 = por %p41, %p42
    %p44 = scmp.ne.s32.totalorder %s33, %s36
    %p45 = scmp.eq.s32.totalorder %s16, 8
    %p46 = por %p44, %p45
    %p47 = scmp.ne.s32.totalorder %s36, %s37
    %p48 = scmp.eq.s32.totalorder %s16, 0
    %p49 = por %p47, %p48
    %p50 = scmp.ne.s32.totalorder %s36, %s37
    %p51 = scmp.eq.s32.totalorder %s17, 8
    %p52 = por %p50, %p51
    %p54 = scmp.ne.s32.totalorder %s37, %s53
    %p55 = scmp.eq.s32.totalorder %s17, 0
    %p56 = por %p54, %p55
    %s57 = ssub.s32 %s19, %s26
    %p58 = scmp.eq.s32.totalorder %s57, 0
    %s60 = sadd.s32 %s59, 1
    %s61 = scalar_select %p58, %s59, %s60
    %p64 = pneg %p58
    %p65 = scmp.eq.s32.totalorder %s11, 8
    %p66 = por %p64, %p65
    %p67 = scmp.ne.s32.totalorder %s59, %s62
    %p68 = scmp.eq.s32.totalorder %s11, 0
    %p69 = por %p67, %p68
    %p70 = scmp.ne.s32.totalorder %s59, %s62
    %p71 = scmp.eq.s32.totalorder %s16, 8
    %p72 = por %p70, %p71
    %p73 = scmp.ne.s32.totalorder %s62, %s63
    %p74 = scmp.eq.s32.totalorder %s16, 0
    %p75 = por %p73, %p74
    %p76 = scmp.ne.s32.totalorder %s62, %s63
    %p77 = scmp.eq.s32.totalorder %s17, 8
    %p78 = por %p76, %p77
    %p80 = scmp.ne.s32.totalorder %s63, %s79
    %p81 = scmp.eq.s32.totalorder %s17, 0
    %p82 = por %p80, %p81
    %s83 = ssub.s32 %s18, %s30
    %p84 = scmp.eq.s32.totalorder %s83, 0
    %s86 = sadd.s32 %s85, 1
    %s87 = scalar_select %p84, %s85, %s86
    %p90 = pneg %p84
    %p91 = scmp.eq.s32.totalorder %s11, 8
    %p92 = por %p90, %p91
    %p93 = scmp.ne.s32.totalorder %s85, %s88
    %p94 = scmp.eq.s32.totalorder %s11, 0
    %p95 = por %p93, %p94
    %p96 = scmp.ne.s32.totalorder %s85, %s88
    %p97 = scmp.eq.s32.totalorder %s16, 8
    %p98 = por %p96, %p97
    %p99 = scmp.ne.s32.totalorder %s88, %s89
    %p100 = scmp.eq.s32.totalorder %s16, 0
    %p101 = por %p99, %p100
    %p102 = scmp.ne.s32.totalorder %s88, %s89
    %p103 = scmp.eq.s32.totalorder %s17, 8
    %p104 = por %p102, %p103
    %p106 = scmp.ne.s32.totalorder %s89, %s105
    %p107 = scmp.eq.s32.totalorder %s17, 0
    %p108 = por %p106, %p107
    %s109 = ssub.s32 %s18, %s30
    %p110 = scmp.eq.s32.totalorder %s109, 0
    %s112 = sadd.s32 %s111, 1
    %s113 = scalar_select %p110, %s111, %s112
    %p116 = pneg %p110
    %p117 = scmp.eq.s32.totalorder %s11, 8
    %p118 = por %p116, %p117
    %p119 = scmp.ne.s32.totalorder %s111, %s114
    %p120 = scmp.eq.s32.totalorder %s11, 0
    %p121 = por %p119, %p120
    %p122 = scmp.ne.s32.totalorder %s111, %s114
    %p123 = scmp.eq.s32.totalorder %s16, 8
    %p124 = por %p122, %p123
    %p125 = scmp.ne.s32.totalorder %s114, %s115
    %p126 = scmp.eq.s32.totalorder %s16, 0
    %p127 = por %p125, %p126
    %p128 = scmp.ne.s32.totalorder %s114, %s115
    %p129 = scmp.eq.s32.totalorder %s17, 8
    %p130 = por %p128, %p129
    %p132 = scmp.ne.s32.totalorder %s115, %s131
    %p133 = scmp.eq.s32.totalorder %s17, 0
    %p134 = por %p132, %p133
    %s135 = ssub.s32 %s18, %s30
    %p136 = scmp.eq.s32.totalorder %s135, 0
    %s138 = sadd.s32 %s137, 1
    %s139 = scalar_select %p136, %s137, %s138
    %p142 = pneg %p136
    %p143 = scmp.eq.s32.totalorder %s11, 8
    %p144 = por %p142, %p143
    %p145 = scmp.ne.s32.totalorder %s137, %s140
    %p146 = scmp.eq.s32.totalorder %s11, 0
    %p147 = por %p145, %p146
    %p148 = scmp.ne.s32.totalorder %s137, %s140
    %p149 = scmp.eq.s32.totalorder %s16, 8
    %p150 = por %p148, %p149
    %p151 = scmp.ne.s32.totalorder %s140, %s141
    %p152 = scmp.eq.s32.totalorder %s16, 0
    %p153 = por %p151, %p152
    %p154 = scmp.ne.s32.totalorder %s140, %s141
    %p155 = scmp.eq.s32.totalorder %s17, 8
    %p156 = por %p154, %p155
    %p158 = scmp.ne.s32.totalorder %s141, %s157
    %p159 = scmp.eq.s32.totalorder %s17, 0
    %p160 = por %p158, %p159
    %s161 = ssub.s32 %s18, %s30
    %p162 = scmp.eq.s32.totalorder %s161, 0
    %s164 = sadd.s32 %s163, 1
    %s165 = scalar_select %p162, %s163, %s164
    %p168 = pneg %p162
    %p169 = scmp.eq.s32.totalorder %s11, 8
    %p170 = por %p168, %p169
    %p171 = scmp.ne.s32.totalorder %s163, %s166
    %p172 = scmp.eq.s32.totalorder %s11, 0
    %p173 = por %p171, %p172
    %p174 = scmp.ne.s32.totalorder %s163, %s166
    %p175 = scmp.eq.s32.totalorder %s16, 8
    %p176 = por %p174, %p175
    %p177 = scmp.ne.s32.totalorder %s166, %s167
    %p178 = scmp.eq.s32.totalorder %s16, 0
    %p179 = por %p177, %p178
    %p180 = scmp.ne.s32.totalorder %s166, %s167
    %p181 = scmp.eq.s32.totalorder %s17, 8
    %p182 = por %p180, %p181
    %p184 = scmp.ne.s32.totalorder %s167, %s183
    %p185 = scmp.eq.s32.totalorder %s17, 0
    %p186 = por %p184, %p185
    %p187 = scmp.le.s32.totalorder 1, %s11
    %p188 = scmp.lt.s32.totalorder %s11, 10
    %p189 = pnand %p187, %p188
    %p190 = pneg %p189
    // Predicated region
    $region9: #{tpu_custom_call.1} parent=5 // pred_check
      _
    $region10: #{tpu_custom_call.1} parent=5 // pred_check_branch
      %192 = sbr.rel (%p189) target = $region12
    $region11: #{tpu_custom_call.1} parent=5 // pred_region
      %s193 = ssub.s32 %s11, 1
    $region12: #{tpu_custom_call.1} parent=5 // pred_fallthru
      _
    %p194 = scmp.lt.s32.totalorder %s11, 9
    // Predicated region
    $region13: #{tpu_custom_call.1} parent=5 // pred_check
      %p195 = pneg %p194
    $region14: #{tpu_custom_call.1} parent=5 // pred_check_branch
      %197 = sbr.rel (%p195) target = $region16
    $region15: #{tpu_custom_call.1} parent=5 // pred_region
      // Predicated region
      $region17: #{tpu_custom_call.1} parent=15 // pred_check
        %p198 = pneg %p43
      $region18: #{tpu_custom_call.1} parent=15 // pred_check_branch
        %200 = sbr.rel (%p198) target = $region20
      $region19: #{tpu_custom_call.1} parent=15 // pred_region
        %s201 = smul.u32 4, %s18
        %p202 = scmp.lt.s32.totalorder %s201, 11
        %s203 = scalar_select %p202, %s201, 11
        %s204 = smul.addr %s203, 4
        %s205 = scalar_lea.vmem %s0, %s204
        %s206 = smul.u32 4, %s18
      $region20: #{tpu_custom_call.1} parent=15 // pred_fallthru
        _
      // Predicated region
      $region21: #{tpu_custom_call.1} parent=15 // pred_check
        %p207 = pneg %p69
      $region22: #{tpu_custom_call.1} parent=15 // pred_check_branch
        %209 = sbr.rel (%p207) target = $region24
      $region23: #{tpu_custom_call.1} parent=15 // pred_region
        %s210 = smul.u32 16, %s19
        %p211 = scmp.lt.s32.totalorder %s210, 47
        %s212 = scalar_select %p211, %s210, 47
        %s213 = smul.addr %s212, 4
        %s214 = scalar_lea.vmem %s1, %s213
        %s215 = smul.u32 16, %s19
      $region24: #{tpu_custom_call.1} parent=15 // pred_fallthru
        _
      // Predicated region
      $region25: #{tpu_custom_call.1} parent=15 // pred_check
        %p216 = pneg %p95
      $region26: #{tpu_custom_call.1} parent=15 // pred_check_branch
        %218 = sbr.rel (%p216) target = $region28
      $region27: #{tpu_custom_call.1} parent=15 // pred_region
        %s219 = smul.u32 4, %s18
        %p220 = scmp.lt.s32.totalorder %s219, 11
        %s221 = scalar_select %p220, %s219, 11
        %s222 = smul.addr %s221, 8
        %s223 = scalar_lea.vmem %s2, %s222
        %s224 = smul.u32 4, %s18
      $region28: #{tpu_custom_call.1} parent=15 // pred_fallthru
        _
      // Predicated region
      $region29: #{tpu_custom_call.1} parent=15 // pred_check
        %p225 = pneg %p121
      $region30: #{tpu_custom_call.1} parent=15 // pred_check_branch
        %227 = sbr.rel (%p225) target = $region32
      $region31: #{tpu_custom_call.1} parent=15 // pred_region
        %s228 = smul.u32 4, %s18
        %p229 = scmp.lt.s32.totalorder %s228, 11
        %s230 = scalar_select %p229, %s228, 11
        %s231 = smul.addr %s230, 8
        %s232 = scalar_lea.vmem %s3, %s231
        %s233 = smul.u32 4, %s18
      $region32: #{tpu_custom_call.1} parent=15 // pred_fallthru
        _
      // Predicated region
      $region33: #{tpu_custom_call.1} parent=15 // pred_check
        %p234 = pneg %p147
      $region34: #{tpu_custom_call.1} parent=15 // pred_check_branch
        %236 = sbr.rel (%p234) target = $region36
      $region35: #{tpu_custom_call.1} parent=15 // pred_region
        %s237 = smul.u32 4, %s18
        %p238 = scmp.lt.s32.totalorder %s237, 11
        %s239 = scalar_select %p238, %s237, 11
        %s240 = smul.addr %s239, 8
        %s241 = scalar_lea.vmem %s4, %s240
        %s242 = smul.u32 4, %s18
      $region36: #{tpu_custom_call.1} parent=15 // pred_fallthru
        _
    $region16: #{tpu_custom_call.1} parent=5 // pred_fallthru
      _
    %p243 = scmp.le.s32.totalorder 1, %s11
    %p244 = scmp.lt.s32.totalorder %s11, 10
    %p245 = pnand %p243, %p244
    %p246 = pneg %p245
    // Predicated region
    $region37: #{tpu_custom_call.1} parent=5 // pred_check
      _
    $region38: #{tpu_custom_call.1} parent=5 // pred_check_branch
      %248 = sbr.rel (%p245) target = $region40
    $region39: #{tpu_custom_call.1} parent=5 // pred_region
      %s249 = ssub.s32 %s11, 1
      %s250 = smul.u32 4, %s20
      %p251 = scmp.lt.s32.totalorder %s250, 11
      %s252 = scalar_select %p251, %s250, 11
      %s253 = smul.addr %s252, 4
      %s254 = scalar_lea.vmem %s0, %s253
      %p255 = pneg %p49
      %p256 = pneg %p46
      %s257 = smul.u32 16, %s21
      %p258 = scmp.lt.s32.totalorder %s257, 47
      %s259 = scalar_select %p258, %s257, 47
      %s260 = smul.addr %s259, 4
      %s261 = scalar_lea.vmem %s1, %s260
      %p262 = pneg %p75
      %p263 = pneg %p72
      %s264 = smul.u32 4, %s20
      %p265 = scmp.lt.s32.totalorder %s264, 11
      %s266 = scalar_select %p265, %s264, 11
      %s267 = smul.addr %s266, 8
      %s268 = scalar_lea.vmem %s2, %s267
      %p269 = pneg %p101
      %p270 = pneg %p98
      %s271 = smul.u32 4, %s20
      %p272 = scmp.lt.s32.totalorder %s271, 11
      %s273 = scalar_select %p272, %s271, 11
      %s274 = smul.addr %s273, 8
      %s275 = scalar_lea.vmem %s3, %s274
      %p276 = pneg %p127
      %p277 = pneg %p124
      %s278 = smul.u32 4, %s20
      %p279 = scmp.lt.s32.totalorder %s278, 11
      %s280 = scalar_select %p279, %s278, 11
      %s281 = smul.addr %s280, 8
      %s282 = scalar_lea.vmem %s4, %s281
      %p283 = pneg %p153
      %p284 = pneg %p150
      %p285 = pneg %p179
      %p286 = pneg %p176
      %s287 = smul.u32 4, %s20
      %p288 = scmp.lt.s32.totalorder %s287, 11
      %s289 = scalar_select %p288, %s287, 11
      %s290 = smul.addr %s289, 8
      %s291 = scalar_lea.vmem %s5, %s290
      %s292 = smul.u32 4, %s20
      %p293 = scmp.lt.s32.totalorder %s292, 11
      %s294 = scalar_select %p293, %s292, 11
      %s295 = smul.addr %s294, 4
      %s296 = scalar_lea.vmem %s0, %s295
      %s297 = smul.u32 4, %s20
      %s298 = smul.u32 16, %s21
      %p299 = scmp.lt.s32.totalorder %s298, 47
      %s300 = scalar_select %p299, %s298, 47
      %s301 = smul.addr %s300, 4
      %s302 = scalar_lea.vmem %s1, %s301
      %s303 = smul.u32 16, %s21
      %s304 = smul.u32 4, %s20
      %p305 = scmp.lt.s32.totalorder %s304, 11
      %s306 = scalar_select %p305, %s304, 11
      %s307 = smul.addr %s306, 8
      %s308 = scalar_lea.vmem %s2, %s307
      %s309 = smul.u32 4, %s20
      %s310 = smul.u32 4, %s20
      %p311 = scmp.lt.s32.totalorder %s310, 11
      %s312 = scalar_select %p311, %s310, 11
      %s313 = smul.addr %s312, 8
      %s314 = scalar_lea.vmem %s3, %s313
      %s315 = smul.u32 4, %s20
      %s316 = smul.u32 4, %s20
      %p317 = scmp.lt.s32.totalorder %s316, 11
      %s318 = scalar_select %p317, %s316, 11
      %s319 = smul.addr %s318, 8
      %s320 = scalar_lea.vmem %s4, %s319
      %s321 = smul.u32 4, %s20
      %s322 = smul.u32 4, %s20
      %p323 = scmp.lt.s32.totalorder %s322, 11
      %s324 = scalar_select %p323, %s322, 11
      %s325 = smul.addr %s324, 8
      %s326 = scalar_lea.vmem %s5, %s325
      %s327 = smul.u32 4, %s20
      %p329 = scmp.eq.s32.totalorder %s21, 0
      // Predicated region
      $region41: #{tpu_custom_call.1} parent=39 // pred_check
        %p330 = pneg %p329
      $region42: #{tpu_custom_call.1} parent=39 // pred_check_branch
        %332 = sbr.rel (%p330) target = $region44
      $region43: #{tpu_custom_call.1} parent=39 // pred_region
        %vm333 = vcmask 7168
        %334 = vst.msk [vmem:[#allocation2] sm:$0xff] %vm333, -inf
        %335 = vst.msk [vmem:[#allocation2 + $0x8] sm:$0xff] %vm333, -inf
        %336 = vst.msk [vmem:[#allocation2 + $0x10] sm:$0xff] %vm333, -inf
        %337 = vst.msk [vmem:[#allocation2 + $0x18] sm:$0xff] %vm333, -inf
        %338 = vst.msk [vmem:[#allocation3] sm:$0xff] %vm333, 0.0
        %339 = vst.msk [vmem:[#allocation3 + $0x8] sm:$0xff] %vm333, 0.0
        %340 = vst.msk [vmem:[#allocation3 + $0x10] sm:$0xff] %vm333, 0.0
        %341 = vst.msk [vmem:[#allocation3 + $0x18] sm:$0xff] %vm333, 0.0
      $region44: #{tpu_custom_call.1} parent=39 // pred_fallthru
        _
      %v342 = vld [vmem:[%s296] sm:$0xf]
      %v343 = vld [vmem:[%s296 + $0x4] sm:$0xf]
      %v344 = vld [vmem:[%s296 + $0x8] sm:$0xf]
      %v345 = vld [vmem:[%s296 + $0xc] sm:$0xf]
      %v346 = vld [vmem:[%s302] sm:$0xf]
      %v347 = vld [vmem:[%s302 + $0x4] sm:$0xf]
      %v348 = vld [vmem:[%s302 + $0x8] sm:$0xf]
      %v349 = vld [vmem:[%s302 + $0xc] sm:$0xf]
      %v350 = vld [vmem:[%s302 + $0x10] sm:$0xf]
      %v351 = vld [vmem:[%s302 + $0x14] sm:$0xf]
      %v352 = vld [vmem:[%s302 + $0x18] sm:$0xf]
      %v353 = vld [vmem:[%s302 + $0x1c] sm:$0xf]
      %v354 = vld [vmem:[%s302 + $0x20] sm:$0xf]
      %v355 = vld [vmem:[%s302 + $0x24] sm:$0xf]
      %v356 = vld [vmem:[%s302 + $0x28] sm:$0xf]
      %v357 = vld [vmem:[%s302 + $0x2c] sm:$0xf]
      %v358 = vld [vmem:[%s302 + $0x30] sm:$0xf]
      %v359 = vld [vmem:[%s302 + $0x34] sm:$0xf]
      %v360 = vld [vmem:[%s302 + $0x38] sm:$0xf]
      %v361 = vld [vmem:[%s302 + $0x3c] sm:$0xf]
      %v366 = vunpack.c.l.b16 %v342
      %v367 = vunpack.c.l.b16 %v343
      %v368 = vunpack.c.l.b16 %v344
      %v369 = vunpack.c.l.b16 %v345
      %v370 = vpack.c.b16 %v367, %v366
      %v371 = vpack.c.b16 %v369, %v368
      %v390 = vunpack.c.l.b16 %v346
      %v391 = vunpack.c.l.b16 %v347
      %v392 = vunpack.c.l.b16 %v348
      %v393 = vunpack.c.l.b16 %v349
      %v394 = vunpack.c.l.b16 %v350
      %v395 = vunpack.c.l.b16 %v351
      %v396 = vunpack.c.l.b16 %v352
      %v397 = vunpack.c.l.b16 %v353
      %v398 = vunpack.c.l.b16 %v354
      %v399 = vunpack.c.l.b16 %v355
      %v400 = vunpack.c.l.b16 %v356
      %v401 = vunpack.c.l.b16 %v357
      %v402 = vunpack.c.l.b16 %v358
      %v403 = vunpack.c.l.b16 %v359
      %v404 = vunpack.c.l.b16 %v360
      %v405 = vunpack.c.l.b16 %v361
      %v406 = vpack.c.b16 %v391, %v390
      %v407 = vpack.c.b16 %v393, %v392
      %v408 = vpack.c.b16 %v395, %v394
      %v409 = vpack.c.b16 %v397, %v396
      %v410 = vpack.c.b16 %v399, %v398
      %v411 = vpack.c.b16 %v401, %v400
      %v412 = vpack.c.b16 %v403, %v402
      %v413 = vpack.c.b16 %v405, %v404
      %422 = vmatprep.subr.bf16.mxu0 0
      %423 = vmatpush1.bf16.xpose.msra.mxu0 %v406
      %424 = vmatprep.subr.bf16.mxu0 0
      %425 = vmatpush1.bf16.xpose.msra.mxu0 %v407
      %426 = vmatprep.subr.bf16.mxu0 0
      %427 = vmatpush1.bf16.xpose.msra.mxu0 %v408
      %428 = vmatprep.subr.bf16.mxu0 0
      %429 = vmatpush1.bf16.xpose.msra.mxu0 %v409
      %430 = vmatprep.subr.bf16.mxu0 0
      %431 = vmatpush1.bf16.xpose.msra.mxu0 %v410
      %432 = vmatprep.subr.bf16.mxu0 0
      %433 = vmatpush1.bf16.xpose.msra.mxu0 %v411
      %434 = vmatprep.subr.bf16.mxu0 0
      %435 = vmatpush1.bf16.xpose.msra.mxu0 %v412
      %436 = vmatprep.subr.bf16.mxu0 0
      %437 = vmatpush1.bf16.xpose.msra.mxu0 %v413
      %438 = vmatprep.subr.bf16.mxu0 0
      %439 = vmatpush1.bf16.xpose.msra.mxu0 0
      %440 = vmatprep.subr.bf16.mxu0 0
      %441 = vmatpush1.bf16.xpose.msra.mxu0 0
      %442 = vmatprep.subr.bf16.mxu0 0
      %443 = vmatpush1.bf16.xpose.msra.mxu0 0
      %444 = vmatprep.subr.bf16.mxu0 0
      %445 = vmatpush1.bf16.xpose.msra.mxu0 0
      %446 = vmatprep.subr.bf16.mxu0 0
      %447 = vmatpush1.bf16.xpose.msra.mxu0 0
      %448 = vmatprep.subr.bf16.mxu0 0
      %449 = vmatpush1.bf16.xpose.msra.mxu0 0
      %450 = vmatprep.subr.bf16.mxu0 0
      %451 = vmatpush1.bf16.xpose.msra.mxu0 0
      %452 = vmatprep.subr.bf16.mxu0 0
      %453 = vmatpush1.bf16.xpose.msra.mxu0 0
      %454 = vmatprep.mubr.bf16.mxu0 0
      %455 = vmatmul.mubr.bf16.gmra.mrb[0].mxu0 %v370
      %v456 = vpop.f32.mrb[0].mxu0
      %v457 = vadd.f32 0.0, %v456
      %v458 = vpop.f32.mrb[0].mxu0
      %v459 = vpop.f32.mrb[0].mxu0
      %v460 = vadd.f32 0.0, %v459
      %v461 = vpop.f32.mrb[0].mxu0
      %462 = vmatprep.mubr.bf16.mxu0 0
      %463 = vmatmul.mubr.bf16.gmra.mrb[0].mxu0 %v371
      %v464 = vpop.f32.mrb[0].mxu0
      %v465 = vadd.f32 0.0, %v464
      %v466 = vpop.f32.mrb[0].mxu0
      %v467 = vpop.f32.mrb[0].mxu0
      %v468 = vadd.f32 0.0, %v467
      %v469 = vpop.f32.mrb[0].mxu0
      %470 = vdwg.mxu0
      %v471 = vld [vmem:[%s308] sm:$0xff]
      %v472 = vld [vmem:[%s308 + $0x8] sm:$0xff]
      %v473 = vld [vmem:[%s308 + $0x10] sm:$0xff]
      %v474 = vld [vmem:[%s308 + $0x18] sm:$0xff]
      %v475 = vld [vmem:[%s314] sm:$0xff]
      %v476 = vld [vmem:[%s314 + $0x8] sm:$0xff]
      %v477 = vld [vmem:[%s314 + $0x10] sm:$0xff]
      %v478 = vld [vmem:[%s314 + $0x18] sm:$0xff]
      %480 = vset.pattern.permute.xlu0 0
      %481 = vperm.xlu0 %480, %v471
      %v482 = vpop.permute.xlu0 %481
      %485 = vset.pattern.permute.xlu0 0
      %486 = vperm.xlu0 %485, %v472
      %v487 = vpop.permute.xlu0 %486
      %490 = vset.pattern.permute.xlu0 0
      %491 = vperm.xlu0 %490, %v473
      %v492 = vpop.permute.xlu0 %491
      %495 = vset.pattern.permute.xlu0 0
      %496 = vperm.xlu0 %495, %v474
      %v497 = vpop.permute.xlu0 %496
      %vm499 = vcmp.ge.f32.partialorder %v482, %v457
      %vm500 = vcmp.ge.f32.partialorder %v487, %v460
      %vm501 = vcmp.ge.f32.partialorder %v492, %v465
      %vm502 = vcmp.ge.f32.partialorder %v497, %v468
      %504 = vset.pattern.permute.xlu0 0
      %505 = vperm.xlu0 %504, %v475
      %v506 = vpop.permute.xlu0 %505
      %509 = vset.pattern.permute.xlu0 0
      %510 = vperm.xlu0 %509, %v476
      %v511 = vpop.permute.xlu0 %510
      %514 = vset.pattern.permute.xlu0 0
      %515 = vperm.xlu0 %514, %v477
      %v516 = vpop.permute.xlu0 %515
      %519 = vset.pattern.permute.xlu0 0
      %520 = vperm.xlu0 %519, %v478
      %v521 = vpop.permute.xlu0 %520
      %v523 = vadd.f32 %v457, %v506
      %v524 = vadd.f32 %v460, %v511
      %v525 = vadd.f32 %v465, %v516
      %v526 = vadd.f32 %v468, %v521
      %v527 = vmul.f32 %v457, %v523
      %v528 = vmul.f32 %v460, %v524
      %v529 = vmul.f32 %v465, %v525
      %v530 = vmul.f32 %v468, %v526
      %v531 = vsel %vm499, %v457, %v527
      %v532 = vsel %vm500, %v460, %v528
      %v533 = vsel %vm501, %v465, %v529
      %v534 = vsel %vm502, %v468, %v530
      %v535 = vlaneseq
      %v536 = vand.u32 %v535, 127
      %v537 = vld [vmem:[%s320] sm:$0xff]
      %v538 = vld [vmem:[%s320 + $0x8] sm:$0xff]
      %v539 = vld [vmem:[%s320 + $0x10] sm:$0xff]
      %v540 = vld [vmem:[%s320 + $0x18] sm:$0xff]
      %s541 = smul.u32 %s21, 128
      %v542 = vstv %s541
      %v543 = vsub.s32 %v537, %v542
      %v544 = vsub.s32 %v538, %v542
      %v545 = vsub.s32 %v539, %v542
      %v546 = vsub.s32 %v540, %v542
      %547 = vset.pattern.permute.xlu0 0
      %548 = vperm.xlu0 %547, %v543
      %v549 = vpop.permute.xlu0 %548
      %550 = vset.pattern.permute.xlu0 0
      %551 = vperm.xlu0 %550, %v544
      %v552 = vpop.permute.xlu0 %551
      %553 = vset.pattern.permute.xlu0 0
      %554 = vperm.xlu0 %553, %v545
      %v555 = vpop.permute.xlu0 %554
      %556 = vset.pattern.permute.xlu0 0
      %557 = vperm.xlu0 %556, %v546
      %v558 = vpop.permute.xlu0 %557
      %vm559 = vcmp.eq.s32.totalorder %v536, %v549
      %vm560 = vcmp.eq.s32.totalorder %v536, %v552
      %vm561 = vcmp.eq.s32.totalorder %v536, %v555
      %vm562 = vcmp.eq.s32.totalorder %v536, %v558
      %v563 = vsel %vm559, %v482, %v531
      %v564 = vsel %vm560, %v487, %v532
      %v565 = vsel %vm561, %v492, %v533
      %v566 = vsel %vm562, %v497, %v534
      %v567 = vmul.f32 %v563, 32.0
      %v568 = vmul.f32 %v564, 32.0
      %v569 = vmul.f32 %v565, 32.0
      %v570 = vmul.f32 %v566, 32.0
      %p571 = scmp.lt.s32.totalorder %s21, 2
      // Predicated region
      $region45: #{tpu_custom_call.1} parent=39 // pred_check
        %p572 = pneg %p571
      $region46: #{tpu_custom_call.1} parent=39 // pred_check_branch
        %574 = sbr.rel (%p572) target = $region48
      $region47: #{tpu_custom_call.1} parent=39 // pred_region
        %v575 = vld [vmem:[#allocation2] sm:$0xff]
        %v576 = vld [vmem:[#allocation2 + $0x8] sm:$0xff]
        %v577 = vld [vmem:[#allocation2 + $0x10] sm:$0xff]
        %v578 = vld [vmem:[#allocation2 + $0x18] sm:$0xff]
        %579 = vmax.xlane.f32.xlu0 %v567
        %v580 = vpop.xlane.xlu0 %579
        %581 = vmax.xlane.f32.xlu0 %v568
        %v582 = vpop.xlane.xlu0 %581
        %583 = vmax.xlane.f32.xlu0 %v569
        %v584 = vpop.xlane.xlu0 %583
        %585 = vmax.xlane.f32.xlu0 %v570
        %v586 = vpop.xlane.xlu0 %585
        %v587 = vmax.f32 %v575, %v580
        %v588 = vmax.f32 %v576, %v582
        %v589 = vmax.f32 %v577, %v584
        %v590 = vmax.f32 %v578, %v586
        %v591 = vld [vmem:[#allocation3] sm:$0xff]
        %v592 = vld [vmem:[#allocation3 + $0x8] sm:$0xff]
        %v593 = vld [vmem:[#allocation3 + $0x10] sm:$0xff]
        %v594 = vld [vmem:[#allocation3 + $0x18] sm:$0xff]
        %v595 = vsub.f32 %v575, %v587
        %v596 = vsub.f32 %v576, %v588
        %v597 = vsub.f32 %v577, %v589
        %v598 = vsub.f32 %v578, %v590
        %v599 = vmul.f32 %v595, 1.442695
        %v600 = vpow.pop %v599
        %v601 = vmul.f32 %v596, 1.442695
        %v602 = vpow.pop %v601
        %v603 = vmul.f32 %v597, 1.442695
        %v604 = vpow.pop %v603
        %v605 = vmul.f32 %v598, 1.442695
        %v606 = vpow.pop %v605
        %v607 = vmul.f32 %v591, %v600
        %v608 = vmul.f32 %v592, %v602
        %v609 = vmul.f32 %v593, %v604
        %v610 = vmul.f32 %v594, %v606
        %612 = vset.pattern.permute.xlu0 0
        %613 = vperm.xlu0 %612, %v587
        %v614 = vpop.permute.xlu0 %613
        %617 = vset.pattern.permute.xlu0 0
        %618 = vperm.xlu0 %617, %v588
        %v619 = vpop.permute.xlu0 %618
        %622 = vset.pattern.permute.xlu0 0
        %623 = vperm.xlu0 %622, %v589
        %v624 = vpop.permute.xlu0 %623
        %627 = vset.pattern.permute.xlu0 0
        %628 = vperm.xlu0 %627, %v590
        %v629 = vpop.permute.xlu0 %628
        %v631 = vsub.f32 %v567, %v614
        %v632 = vsub.f32 %v568, %v619
        %v633 = vsub.f32 %v569, %v624
        %v634 = vsub.f32 %v570, %v629
        %v635 = vmul.f32 %v631, 1.442695
        %v636 = vpow.pop %v635
        %v637 = vmul.f32 %v632, 1.442695
        %v638 = vpow.pop %v637
        %v639 = vmul.f32 %v633, 1.442695
        %v640 = vpow.pop %v639
        %v641 = vmul.f32 %v634, 1.442695
        %v642 = vpow.pop %v641
        %643 = vadd.xlane.f32.xlu0 %v636
        %v644 = vpop.xlane.xlu0 %643
        %645 = vadd.xlane.f32.xlu0 %v638
        %v646 = vpop.xlane.xlu0 %645
        %647 = vadd.xlane.f32.xlu0 %v640
        %v648 = vpop.xlane.xlu0 %647
        %649 = vadd.xlane.f32.xlu0 %v642
        %v650 = vpop.xlane.xlu0 %649
        %v651 = vadd.f32 %v607, %v644
        %v652 = vadd.f32 %v608, %v646
        %v653 = vadd.f32 %v609, %v648
        %v654 = vadd.f32 %v610, %v650
        %vm655 = vcmask 7168
        %656 = vst.msk [vmem:[#allocation3] sm:$0xff] %vm655, %v651
        %657 = vst.msk [vmem:[#allocation3 + $0x8] sm:$0xff] %vm655, %v652
        %658 = vst.msk [vmem:[#allocation3 + $0x10] sm:$0xff] %vm655, %v653
        %659 = vst.msk [vmem:[#allocation3 + $0x18] sm:$0xff] %vm655, %v654
        %660 = vst.msk [vmem:[#allocation2] sm:$0xff] %vm655, %v587
        %661 = vst.msk [vmem:[#allocation2 + $0x8] sm:$0xff] %vm655, %v588
        %662 = vst.msk [vmem:[#allocation2 + $0x10] sm:$0xff] %vm655, %v589
        %663 = vst.msk [vmem:[#allocation2 + $0x18] sm:$0xff] %vm655, %v590
      $region48: #{tpu_custom_call.1} parent=39 // pred_fallthru
        _
      %p664 = scmp.eq.s32.totalorder %s21, 2
      // Predicated region
      $region49: #{tpu_custom_call.1} parent=39 // pred_check
        %p665 = pneg %p664
      $region50: #{tpu_custom_call.1} parent=39 // pred_check_branch
        %667 = sbr.rel (%p665) target = $region52
      $region51: #{tpu_custom_call.1} parent=39 // pred_region
        %s668 = ssub.s32 300, %s541
        %v669 = vstv %s668
        %vm670 = vcmp.lt.s32.totalorder %v536, %v669
        %v671 = vsel %vm670, %v567, -1e+30
        %v672 = vsel %vm670, %v568, -1e+30
        %v673 = vsel %vm670, %v569, -1e+30
        %v674 = vsel %vm670, %v570, -1e+30
        %v675 = vld [vmem:[#allocation2] sm:$0xff]
        %v676 = vld [vmem:[#allocation2 + $0x8] sm:$0xff]
        %v677 = vld [vmem:[#allocation2 + $0x10] sm:$0xff]
        %v678 = vld [vmem:[#allocation2 + $0x18] sm:$0xff]
        %679 = vmax.xlane.f32.xlu0 %v671
        %v680 = vpop.xlane.xlu0 %679
        %681 = vmax.xlane.f32.xlu0 %v672
        %v682 = vpop.xlane.xlu0 %681
        %683 = vmax.xlane.f32.xlu0 %v673
        %v684 = vpop.xlane.xlu0 %683
        %685 = vmax.xlane.f32.xlu0 %v674
        %v686 = vpop.xlane.xlu0 %685
        %v687 = vmax.f32 %v675, %v680
        %v688 = vmax.f32 %v676, %v682
        %v689 = vmax.f32 %v677, %v684
        %v690 = vmax.f32 %v678, %v686
        %v691 = vld [vmem:[#allocation3] sm:$0xff]
        %v692 = vld [vmem:[#allocation3 + $0x8] sm:$0xff]
        %v693 = vld [vmem:[#allocation3 + $0x10] sm:$0xff]
        %v694 = vld [vmem:[#allocation3 + $0x18] sm:$0xff]
        %v695 = vsub.f32 %v675, %v687
        %v696 = vsub.f32 %v676, %v688
        %v697 = vsub.f32 %v677, %v689
        %v698 = vsub.f32 %v678, %v690
        %v699 = vmul.f32 %v695, 1.442695
        %v700 = vpow.pop %v699
        %v701 = vmul.f32 %v696, 1.442695
        %v702 = vpow.pop %v701
        %v703 = vmul.f32 %v697, 1.442695
        %v704 = vpow.pop %v703
        %v705 = vmul.f32 %v698, 1.442695
        %v706 = vpow.pop %v705
        %v707 = vmul.f32 %v691, %v700
        %v708 = vmul.f32 %v692, %v702
        %v709 = vmul.f32 %v693, %v704
        %v710 = vmul.f32 %v694, %v706
        %712 = vset.pattern.permute.xlu0 0
        %713 = vperm.xlu0 %712, %v687
        %v714 = vpop.permute.xlu0 %713
        %717 = vset.pattern.permute.xlu0 0
        %718 = vperm.xlu0 %717, %v688
        %v719 = vpop.permute.xlu0 %718
        %722 = vset.pattern.permute.xlu0 0
        %723 = vperm.xlu0 %722, %v689
        %v724 = vpop.permute.xlu0 %723
        %727 = vset.pattern.permute.xlu0 0
        %728 = vperm.xlu0 %727, %v690
        %v729 = vpop.permute.xlu0 %728
        %v731 = vsub.f32 %v671, %v714
        %v732 = vsub.f32 %v672, %v719
        %v733 = vsub.f32 %v673, %v724
        %v734 = vsub.f32 %v674, %v729
        %v735 = vmul.f32 %v731, 1.442695
        %v736 = vpow.pop %v735
        %v737 = vmul.f32 %v732, 1.442695
        %v738 = vpow.pop %v737
        %v739 = vmul.f32 %v733, 1.442695
        %v740 = vpow.pop %v739
        %v741 = vmul.f32 %v734, 1.442695
        %v742 = vpow.pop %v741
        %743 = vadd.xlane.f32.xlu0 %v736
        %v744 = vpop.xlane.xlu0 %743
        %745 = vadd.xlane.f32.xlu0 %v738
        %v746 = vpop.xlane.xlu0 %745
        %747 = vadd.xlane.f32.xlu0 %v740
        %v748 = vpop.xlane.xlu0 %747
        %749 = vadd.xlane.f32.xlu0 %v742
        %v750 = vpop.xlane.xlu0 %749
        %v751 = vadd.f32 %v707, %v744
        %v752 = vadd.f32 %v708, %v746
        %v753 = vadd.f32 %v709, %v748
        %v754 = vadd.f32 %v710, %v750
        %vm755 = vcmask 7168
        %756 = vst.msk [vmem:[#allocation3] sm:$0xff] %vm755, %v751
        %757 = vst.msk [vmem:[#allocation3 + $0x8] sm:$0xff] %vm755, %v752
        %758 = vst.msk [vmem:[#allocation3 + $0x10] sm:$0xff] %vm755, %v753
        %759 = vst.msk [vmem:[#allocation3 + $0x18] sm:$0xff] %vm755, %v754
        %760 = vst.msk [vmem:[#allocation2] sm:$0xff] %vm755, %v687
        %761 = vst.msk [vmem:[#allocation2 + $0x8] sm:$0xff] %vm755, %v688
        %762 = vst.msk [vmem:[#allocation2 + $0x10] sm:$0xff] %vm755, %v689
        %763 = vst.msk [vmem:[#allocation2 + $0x18] sm:$0xff] %vm755, %v690
        %v764 = vld [vmem:[#allocation2] sm:$0xff]
        %v765 = vld [vmem:[#allocation2 + $0x8] sm:$0xff]
        %v766 = vld [vmem:[#allocation2 + $0x10] sm:$0xff]
        %v767 = vld [vmem:[#allocation2 + $0x18] sm:$0xff]
        %v768 = vld [vmem:[#allocation3] sm:$0xff]
        %v769 = vld [vmem:[#allocation3 + $0x8] sm:$0xff]
        %v770 = vld [vmem:[#allocation3 + $0x10] sm:$0xff]
        %v771 = vld [vmem:[#allocation3 + $0x18] sm:$0xff]
        %v772 = vlog2.pop %v768
        %v773 = vmul.f32 %v772, 0.6931472
        %v774 = vlog2.pop %v769
        %v775 = vmul.f32 %v774, 0.6931472
        %v776 = vlog2.pop %v770
        %v777 = vmul.f32 %v776, 0.6931472
        %v778 = vlog2.pop %v771
        %v779 = vmul.f32 %v778, 0.6931472
        %v780 = vadd.f32 %v764, %v773
        %v781 = vadd.f32 %v765, %v775
        %v782 = vadd.f32 %v766, %v777
        %v783 = vadd.f32 %v767, %v779
        %v784 = vld [vmem:[%s308] sm:$0xff]
        %v785 = vld [vmem:[%s308 + $0x8] sm:$0xff]
        %v786 = vld [vmem:[%s308 + $0x10] sm:$0xff]
        %v787 = vld [vmem:[%s308 + $0x18] sm:$0xff]
        %v788 = vmul.f32 %v784, 32.0
        %v789 = vmul.f32 %v785, 32.0
        %v790 = vmul.f32 %v786, 32.0
        %v791 = vmul.f32 %v787, 32.0
        %v792 = vsub.f32 %v780, %v788
        %v793 = vsub.f32 %v781, %v789
        %v794 = vsub.f32 %v782, %v790
        %v795 = vsub.f32 %v783, %v791
        %796 = vst.msk [vmem:[%s326] sm:$0xff] %vm755, %v792
        %797 = vst.msk [vmem:[%s326 + $0x8] sm:$0xff] %vm755, %v793
        %798 = vst.msk [vmem:[%s326 + $0x10] sm:$0xff] %vm755, %v794
        %799 = vst.msk [vmem:[%s326 + $0x18] sm:$0xff] %vm755, %v795
      $region52: #{tpu_custom_call.1} parent=39 // pred_fallthru
        _
      %s800 = smul.u32 4, %s20
      %p801 = scmp.lt.s32.totalorder %s800, 11
      %s802 = scalar_select %p801, %s800, 11
      %s803 = smul.addr %s802, 8
      %s804 = scalar_lea.vmem %s5, %s803
      // Predicated region
      $region53: #{tpu_custom_call.1} parent=39 // pred_check
        %p805 = pneg %p176
      $region54: #{tpu_custom_call.1} parent=39 // pred_check_branch
        %807 = sbr.rel (%p805) target = $region56
      $region55: #{tpu_custom_call.1} parent=39 // pred_region
        %s808 = smul.u32 4, %s20
      $region56: #{tpu_custom_call.1} parent=39 // pred_fallthru
        _
    $region40: #{tpu_custom_call.1} parent=5 // pred_fallthru
      _
    %p809 = scmp.le.s32.totalorder 2, %s11
    // Predicated region
    $region57: #{tpu_custom_call.1} parent=5 // pred_check
      %p810 = pneg %p809
    $region58: #{tpu_custom_call.1} parent=5 // pred_check_branch
      %812 = sbr.rel (%p810) target = $region60
    $region59: #{tpu_custom_call.1} parent=5 // pred_region
      %s813 = ssub.s32 %s11, 2
      // Predicated region
      $region61: #{tpu_custom_call.1} parent=59 // pred_check
        %p814 = pneg %p182
      $region62: #{tpu_custom_call.1} parent=59 // pred_check_branch
        %816 = sbr.rel (%p814) target = $region64
      $region63: #{tpu_custom_call.1} parent=59 // pred_region
        %s817 = smul.u32 4, %s22
        %p818 = scmp.lt.s32.totalorder %s817, 11
        %s819 = scalar_select %p818, %s817, 11
        %s820 = smul.addr %s819, 8
        %s821 = scalar_lea.vmem %s5, %s820
      $region64: #{tpu_custom_call.1} parent=59 // pred_fallthru
        _
    $region60: #{tpu_custom_call.1} parent=5 // pred_fallthru
      _
  $region6: #{tpu_custom_call.1} parent=0 // loop_footer
    %s15 = sadd.s32 1, %s11
  $region7: #{tpu_custom_call.1} parent=0 // loop_footer_branch
    %10 = sbr.rel target = $region3
  $region8: #{tpu_custom_call.1} parent=0 // loop_exit
    _

</llo_original>
